<compile_context>
chip_gen: v7x
topology: tpu7x:2x2x1
jax: 0.10.0
libtpu: 0.0.40
codegen_flags: <defaults>
</compile_context>

<pallas_src>
import math
from functools import partial

import jax
import jax.numpy as jnp
from jax import lax
from jax.experimental import pallas as pl
from jax.experimental.pallas import tpu as pltpu


def _mask_loss_kernel(pred_ref, gt_ref, gt_sum_ref, pos_sum_ref, neg_sum_ref,
                      *, n_valid, nblocks):
    """Streaming class-balanced BCE-with-logits partial reduction.

    Grid = (splits, steps). Axis 0 is "parallel" (megacore split), axis 1 is the
    serial reduction over row blocks. Each split owns one (1, 8, 128) f32 output
    block per partial sum (sum(gt), sum(gt*softplus(-x)), sum((1-gt)*softplus(x)))
    and accumulates into it with VPU adds only; the cross-lane reduction and the
    beta / beta_back scalar math happen in the wrapper.
    """
    c = pl.program_id(0)                 # split index (core on v7x)
    i = pl.program_id(1)                 # step within this split
    steps = pl.num_programs(1)
    blk = c * steps + i                  # logical (unclamped) row-block index

    tr, lanes = pred_ref.shape           # static block shape

    @pl.when(i == 0)
    def _init():
        gt_sum_ref[...] = jnp.zeros_like(gt_sum_ref)
        pos_sum_ref[...] = jnp.zeros_like(pos_sum_ref)
        neg_sum_ref[...] = jnp.zeros_like(neg_sum_ref)

    x = pred_ref[...].astype(jnp.float32)
    y = gt_ref[...].astype(jnp.float32)

    def accumulate(xv, yv, neg_mask):
        # Numerically stable softplus (same formulation BCEWithLogits uses),
        # one exp + one log1p per element; sp_pos derived as sp_neg + x.
        sp_neg = jnp.maximum(-xv, 0.0) + jnp.log1p(jnp.exp(-jnp.abs(xv)))
        sp_pos = sp_neg + xv
        t_gt = yv
        t_pos = yv * sp_neg
        t_neg = (1.0 - yv) * sp_pos
        if neg_mask is not None:
            t_neg = jnp.where(neg_mask, t_neg, 0.0)

        def red(t):  # (tr,128) -> (8,128) pure-VPU add tree (free reshape)
            return t.reshape(tr // 8, 8, lanes).sum(axis=0)

        gt_sum_ref[...] += red(t_gt)[None]
        pos_sum_ref[...] += red(t_pos)[None]
        neg_sum_ref[...] += red(t_neg)[None]

    # Fast path: interior blocks are fully valid -> no mask work.
    @pl.when(blk < nblocks - 1)
    def _interior():
        accumulate(x, y, None)

    # Tail path: the single block that can contain padded / out-of-bounds
    # elements, plus clamped duplicate blocks when the split grid over-covers
    # the row range (those mask to an all-zero contribution).
    @pl.when(blk >= nblocks - 1)
    def _tail():
        row_ids = lax.broadcasted_iota(jnp.int32, (tr, lanes), 0)
        lane_ids = lax.broadcasted_iota(jnp.int32, (tr, lanes), 1)
        gidx = (blk * tr + row_ids) * lanes + lane_ids
        valid = gidx < n_valid
        # Replace invalid lanes *before* the transcendentals so garbage in the
        # padded region of a partial boundary block can never become NaN/Inf.
        xm = jnp.where(valid, x, 0.0)
        ym = jnp.where(valid, y, 0.0)
        accumulate(xm, ym, valid)


def _sublane_align(dtype):
    # Sublane packing of the dtype: 8 rows for 32-bit, 16 for 16-bit, 32 for 8-bit.
    return max(8, 32 // jnp.dtype(dtype).itemsize)


def mask_loss(pred, gt, *, tile_rows=4096, num_splits=2):
    """Pallas implementation of MaskLoss.forward. Returns a scalar float32.

    pred: logits (f32 / bf16 / f16). gt: targets in [0,1] (f32 / bf16 / int8 / bool).
    Both are cast to f32 in-kernel, so narrow inputs halve/quarter HBM traffic.
    """
    assert pred.shape == gt.shape
    n = int(math.prod(pred.shape))
    assert n > 0
    assert n < 2**31, "tail-mask index math is int32"

    lanes = 128
    rows = -(-n // lanes)                                   # ceil(n / 128)

    align = max(_sublane_align(pred.dtype), _sublane_align(gt.dtype))
    tr_cap = max(align, (int(tile_rows) // align) * align)  # tile rows, aligned

    if rows >= tr_cap:
        tr = tr_cap
        rows_arr = rows        # partial boundary block handled in-kernel
    else:
        tr = -(-rows // align) * align
        rows_arr = tr          # single (small) block; pad rows up to it

    pad = rows_arr * lanes - n
    pred_flat = pred.reshape(-1)
    gt_flat = gt.reshape(-1)
    if pad:
        # Only taken when n is not lane-aligned or the whole input is smaller
        # than one aligned block. Padded elements are masked out in-kernel, so
        # the pad value is irrelevant (zeros).
        pred_flat = jnp.pad(pred_flat, (0, pad))
        gt_flat = jnp.pad(gt_flat, (0, pad))
    pred2d = pred_flat.reshape(rows_arr, lanes)
    gt2d = gt_flat.reshape(rows_arr, lanes)

    nblocks = -(-rows_arr // tr)
    ns = max(1, min(int(num_splits), nblocks))
    steps = -(-nblocks // ns)

    # Clamp over-covering slots back onto the last real block; their
    # contribution is masked to zero in the kernel (blk >= nblocks).
    def in_map(c, i):
        return (jnp.minimum(c * steps + i, nblocks - 1), 0)

    in_spec = pl.BlockSpec((tr, lanes), in_map)
    out_spec = pl.BlockSpec((1, 8, lanes), lambda c, i: (c, 0, 0))
    out_sds = jax.ShapeDtypeStruct((ns, 8, lanes), jnp.float32)

    gt_sum, pos_sum, neg_sum = pl.pallas_call(
        partial(_mask_loss_kernel, n_valid=n, nblocks=nblocks),
        out_shape=(out_sds, out_sds, out_sds),
        grid_spec=pltpu.PrefetchScalarGridSpec(
            num_scalar_prefetch=0,
            grid=(ns, steps),
            in_specs=[in_spec, in_spec],
            out_specs=(out_spec, out_spec, out_spec),
        ),
        compiler_params=pltpu.CompilerParams(
            dimension_semantics=("parallel", "arbitrary"),
        ),
    )(pred2d, gt2d)

    # Epilogue (tiny): cross-lane/split reductions + the scalar balancing math.
    sum_gt = jnp.sum(gt_sum)
    sum_pos = jnp.sum(pos_sum)
    sum_neg = jnp.sum(neg_sum)

    n_f = jnp.float32(n)
    eps = jnp.float32(1e-10)
    count_pos = sum_gt + eps
    count_neg = n_f - sum_gt
    beta = count_neg / count_pos
    beta_back = count_pos / (count_pos + count_neg)
    mean_loss = (beta * sum_pos + sum_neg) / n_f
    return beta_back * mean_loss


def mask_loss_ref(pred, gt):
    """Pure-JAX reference mirroring the PyTorch module."""
    pred = pred.astype(jnp.float32)
    gt = gt.astype(jnp.float32)
    eps = 1e-10
    count_pos = jnp.sum(gt) + eps
    count_neg = jnp.sum(1.0 - gt)
    beta = count_neg / count_pos
    beta_back = count_pos / (count_pos + count_neg)
    sp_neg = jnp.maximum(-pred, 0.0) + jnp.log1p(jnp.exp(-jnp.abs(pred)))
    sp_pos = sp_neg + pred
    per_elem = beta * gt * sp_neg + (1.0 - gt) * sp_pos
    return beta_back * jnp.mean(per_elem)


if __name__ == "__main__":
    key = jax.random.PRNGKey(0)
    k_pred, k_gt = jax.random.split(key)

    def check(pred, gt, **kw):
        out = jax.block_until_ready(mask_loss(pred, gt, **kw))
        ref = jax.block_until_ready(mask_loss_ref(pred, gt))
        assert jnp.isfinite(out), "non-finite loss"
        assert abs(float(out) - float(ref)) < 1e-4, (float(out), float(ref), kw)

    # 1) NCHW f32 logits/masks, lane-aligned: zero-copy reshape, single block.
    shape = (2, 4, 16, 16)
    pred = jax.random.normal(k_pred, shape, dtype=jnp.float32)
    gt = jax.random.bernoulli(k_gt, p=0.3, shape=shape).astype(jnp.float32)
    check(pred, gt)

    # 2) Ragged element count: exercises the in-kernel tail mask.
    shape2 = (3, 5, 7, 11)
    pred2 = jax.random.normal(k_pred, shape2, dtype=jnp.float32)
    gt2 = jax.random.bernoulli(k_gt, p=0.4, shape=shape2).astype(jnp.float32)
    check(pred2, gt2)

    # 3) Multi-block grid with a 2-way split and an odd block count: exercises
    #    the partial boundary block and the clamped duplicate block.
    shape3 = (2, 4, 64, 64)
    pred3 = jax.random.normal(k_pred, shape3, dtype=jnp.float32)
    gt3 = jax.random.bernoulli(k_gt, p=0.25, shape=shape3).astype(jnp.float32)
    check(pred3, gt3, tile_rows=96, num_splits=2)

    # 4) bf16 logits (cast to f32 in-kernel; halves pred HBM traffic).
    check(pred.astype(jnp.bfloat16), gt)

    print("KERNEL_OK")
</pallas_src>

<mosaic_0001>
module attributes {stable_mosaic.version = 11 : i64} {
  func.func @_mask_loss_kernel(%arg0: i32, %arg1: i32, %arg2: memref<16x128xf32, #tpu.memory_space<vmem>>, %arg3: memref<16x128xf32, #tpu.memory_space<vmem>>, %arg4: memref<1x8x128xf32, #tpu.memory_space<vmem>>, %arg5: memref<1x8x128xf32, #tpu.memory_space<vmem>>, %arg6: memref<1x8x128xf32, #tpu.memory_space<vmem>>) attributes {dimension_semantics = [#tpu.dimension_semantics<parallel>, #tpu.dimension_semantics<arbitrary>], iteration_bounds = array<i64: 1, 1>, scalar_prefetch = 0 : i64, scratch_operands = 0 : i64, tpu.core_type = #tpu.core_type<tc>, window_params = [{transform_indices = @transform_0, window_bounds = array<i64: 16, 128>}, {transform_indices = @transform_1, window_bounds = array<i64: 16, 128>}, {transform_indices = @transform_2, window_bounds = array<i64: 1, 8, 128>}, {transform_indices = @transform_3, window_bounds = array<i64: 1, 8, 128>}, {transform_indices = @transform_4, window_bounds = array<i64: 1, 8, 128>}]} {
    %c1_i32 = arith.constant 1 : i32
    %0 = arith.muli %arg0, %c1_i32 : i32
    %1 = arith.addi %0, %arg1 : i32
    %c0_i32 = arith.constant 0 : i32
    %2 = arith.cmpi eq, %arg1, %c0_i32 : i32
    %3 = arith.extui %2 : i1 to i32
    %c0_i32_0 = arith.constant 0 : i32
    %4 = arith.cmpi ne, %3, %c0_i32_0 : i32
    scf.if %4 {
      %cst = arith.constant 0.000000e+00 : f32
      %13 = vector.broadcast %cst : f32 to vector<1x8x128xf32>
      %c0_8 = arith.constant 0 : index
      %c0_9 = arith.constant 0 : index
      %c0_10 = arith.constant 0 : index
      %14 = vector.load %arg4[%c0_8, %c0_9, %c0_10] : memref<1x8x128xf32, #tpu.memory_space<vmem>>, vector<1x8x128xf32>
      tpu.vector_store %arg4[%c0_8, %c0_9, %c0_10], %13 {strides = array<i32>} : memref<1x8x128xf32, #tpu.memory_space<vmem>>, vector<1x8x128xf32>,
      %cst_11 = arith.constant 0.000000e+00 : f32
      %15 = vector.broadcast %cst_11 : f32 to vector<1x8x128xf32>
      %c0_12 = arith.constant 0 : index
      %c0_13 = arith.constant 0 : index
      %c0_14 = arith.constant 0 : index
      %16 = vector.load %arg5[%c0_12, %c0_13, %c0_14] : memref<1x8x128xf32, #tpu.memory_space<vmem>>, vector<1x8x128xf32>
      tpu.vector_store %arg5[%c0_12, %c0_13, %c0_14], %15 {strides = array<i32>} : memref<1x8x128xf32, #tpu.memory_space<vmem>>, vector<1x8x128xf32>,
      %cst_15 = arith.constant 0.000000e+00 : f32
      %17 = vector.broadcast %cst_15 : f32 to vector<1x8x128xf32>
      %c0_16 = arith.constant 0 : index
      %c0_17 = arith.constant 0 : index
      %c0_18 = arith.constant 0 : index
      %18 = vector.load %arg6[%c0_16, %c0_17, %c0_18] : memref<1x8x128xf32, #tpu.memory_space<vmem>>, vector<1x8x128xf32>
      tpu.vector_store %arg6[%c0_16, %c0_17, %c0_18], %17 {strides = array<i32>} : memref<1x8x128xf32, #tpu.memory_space<vmem>>, vector<1x8x128xf32>,
    } else {
    }
    %c0 = arith.constant 0 : index
    %c0_1 = arith.constant 0 : index
    %5 = vector.load %arg2[%c0, %c0_1] : memref<16x128xf32, #tpu.memory_space<vmem>>, vector<16x128xf32>
    %c0_2 = arith.constant 0 : index
    %c0_3 = arith.constant 0 : index
    %6 = vector.load %arg3[%c0_2, %c0_3] : memref<16x128xf32, #tpu.memory_space<vmem>>, vector<16x128xf32>
    %c0_i32_4 = arith.constant 0 : i32
    %7 = arith.cmpi slt, %1, %c0_i32_4 : i32
    %8 = arith.extui %7 : i1 to i32
    %c0_i32_5 = arith.constant 0 : i32
    %9 = arith.cmpi ne, %8, %c0_i32_5 : i32
    scf.if %9 {
      %cst = arith.constant 0.000000e+00 : f32
      %13 = vector.broadcast %cst : f32 to vector<16x128xf32>
      %14 = arith.subf %13, %5 : vector<16x128xf32>
      %cst_8 = arith.constant 0.000000e+00 : f32
      %15 = vector.broadcast %cst_8 : f32 to vector<16x128xf32>
      %16 = arith.maximumf %14, %15 : vector<16x128xf32>
      %17 = math.absf %5 : vector<16x128xf32>
      %cst_9 = arith.constant 0.000000e+00 : f32
      %18 = vector.broadcast %cst_9 : f32 to vector<16x128xf32>
      %19 = arith.subf %18, %17 : vector<16x128xf32>
      %20 = math.exp %19 : vector<16x128xf32>
      %21 = math.log1p %20 : vector<16x128xf32>
      %22 = arith.addf %16, %21 : vector<16x128xf32>
      %23 = arith.addf %22, %5 : vector<16x128xf32>
      %24 = arith.mulf %6, %22 : vector<16x128xf32>
      %cst_10 = arith.constant 1.000000e+00 : f32
      %25 = vector.broadcast %cst_10 : f32 to vector<16x128xf32>
      %26 = arith.subf %25, %6 : vector<16x128xf32>
      %27 = arith.mulf %26, %23 : vector<16x128xf32>
      %c0_11 = arith.constant 0 : index
      %c0_12 = arith.constant 0 : index
      %c0_13 = arith.constant 0 : index
      %28 = vector.load %arg4[%c0_11, %c0_12, %c0_13] : memref<1x8x128xf32, #tpu.memory_space<vmem>>, vector<1x8x128xf32>
      %29 = vector.shape_cast %6 : vector<16x128xf32> to vector<2x8x128xf32>
      %cst_14 = arith.constant dense<0.000000e+00> : vector<8x128xf32>
      %30 = vector.multi_reduction <add>, %29, %cst_14 [0] : vector<2x8x128xf32> to vector<8x128xf32>
      %31 = vector.shape_cast %30 : vector<8x128xf32> to vector<1x8x128xf32>
      %32 = arith.addf %28, %31 : vector<1x8x128xf32>
      %c0_15 = arith.constant 0 : index
      %c0_16 = arith.constant 0 : index
      %c0_17 = arith.constant 0 : index
      %33 = vector.load %arg4[%c0_15, %c0_16, %c0_17] : memref<1x8x128xf32, #tpu.memory_space<vmem>>, vector<1x8x128xf32>
      tpu.vector_store %arg4[%c0_15, %c0_16, %c0_17], %32 {strides = array<i32>} : memref<1x8x128xf32, #tpu.memory_space<vmem>>, vector<1x8x128xf32>,
      %c0_18 = arith.constant 0 : index
      %c0_19 = arith.constant 0 : index
      %c0_20 = arith.constant 0 : index
      %34 = vector.load %arg5[%c0_18, %c0_19, %c0_20] : memref<1x8x128xf32, #tpu.memory_space<vmem>>, vector<1x8x128xf32>
      %35 = vector.shape_cast %24 : vector<16x128xf32> to vector<2x8x128xf32>
      %cst_21 = arith.constant dense<0.000000e+00> : vector<8x128xf32>
      %36 = vector.multi_reduction <add>, %35, %cst_21 [0] : vector<2x8x128xf32> to vector<8x128xf32>
      %37 = vector.shape_cast %36 : vector<8x128xf32> to vector<1x8x128xf32>
      %38 = arith.addf %34, %37 : vector<1x8x128xf32>
      %c0_22 = arith.constant 0 : index
      %c0_23 = arith.constant 0 : index
      %c0_24 = arith.constant 0 : index
      %39 = vector.load %arg5[%c0_22, %c0_23, %c0_24] : memref<1x8x128xf32, #tpu.memory_space<vmem>>, vector<1x8x128xf32>
      tpu.vector_store %arg5[%c0_22, %c0_23, %c0_24], %38 {strides = array<i32>} : memref<1x8x128xf32, #tpu.memory_space<vmem>>, vector<1x8x128xf32>,
      %c0_25 = arith.constant 0 : index
      %c0_26 = arith.constant 0 : index
      %c0_27 = arith.constant 0 : index
      %40 = vector.load %arg6[%c0_25, %c0_26, %c0_27] : memref<1x8x128xf32, #tpu.memory_space<vmem>>, vector<1x8x128xf32>
      %41 = vector.shape_cast %27 : vector<16x128xf32> to vector<2x8x128xf32>
      %cst_28 = arith.constant dense<0.000000e+00> : vector<8x128xf32>
      %42 = vector.multi_reduction <add>, %41, %cst_28 [0] : vector<2x8x128xf32> to vector<8x128xf32>
      %43 = vector.shape_cast %42 : vector<8x128xf32> to vector<1x8x128xf32>
      %44 = arith.addf %40, %43 : vector<1x8x128xf32>
      %c0_29 = arith.constant 0 : index
      %c0_30 = arith.constant 0 : index
      %c0_31 = arith.constant 0 : index
      %45 = vector.load %arg6[%c0_29, %c0_30, %c0_31] : memref<1x8x128xf32, #tpu.memory_space<vmem>>, vector<1x8x128xf32>
      tpu.vector_store %arg6[%c0_29, %c0_30, %c0_31], %44 {strides = array<i32>} : memref<1x8x128xf32, #tpu.memory_space<vmem>>, vector<1x8x128xf32>,
    } else {
    }
    %c0_i32_6 = arith.constant 0 : i32
    %10 = arith.cmpi sge, %1, %c0_i32_6 : i32
    %11 = arith.extui %10 : i1 to i32
    %c0_i32_7 = arith.constant 0 : i32
    %12 = arith.cmpi ne, %11, %c0_i32_7 : i32
    scf.if %12 {
      %13 = tpu.iota {dimensions = array<i32: 0>} : vector<16x128xi32>
      %14 = tpu.iota {dimensions = array<i32: 1>} : vector<16x128xi32>
      %c16_i32 = arith.constant 16 : i32
      %15 = arith.muli %1, %c16_i32 : i32
      %16 = vector.broadcast %15 : i32 to vector<16x128xi32>
      %17 = arith.addi %16, %13 : vector<16x128xi32>
      %c128_i32 = arith.constant 128 : i32
      %18 = vector.broadcast %c128_i32 : i32 to vector<16x128xi32>
      %19 = arith.muli %17, %18 : vector<16x128xi32>
      %20 = arith.addi %19, %14 : vector<16x128xi32>
      %c2048_i32 = arith.constant 2048 : i32
      %21 = vector.broadcast %c2048_i32 : i32 to vector<16x128xi32>
      %22 = arith.cmpi slt, %20, %21 : vector<16x128xi32>
      %cst = arith.constant 0.000000e+00 : f32
      %23 = vector.broadcast %cst : f32 to vector<16x128xf32>
      %24 = arith.select %22, %5, %23 : vector<16x128xi1>, vector<16x128xf32>
      %cst_8 = arith.constant 0.000000e+00 : f32
      %25 = vector.broadcast %cst_8 : f32 to vector<16x128xf32>
      %26 = arith.select %22, %6, %25 : vector<16x128xi1>, vector<16x128xf32>
      %cst_9 = arith.constant 0.000000e+00 : f32
      %27 = vector.broadcast %cst_9 : f32 to vector<16x128xf32>
      %28 = arith.subf %27, %24 : vector<16x128xf32>
      %cst_10 = arith.constant 0.000000e+00 : f32
      %29 = vector.broadcast %cst_10 : f32 to vector<16x128xf32>
      %30 = arith.maximumf %28, %29 : vector<16x128xf32>
      %31 = math.absf %24 : vector<16x128xf32>
      %cst_11 = arith.constant 0.000000e+00 : f32
      %32 = vector.broadcast %cst_11 : f32 to vector<16x128xf32>
      %33 = arith.subf %32, %31 : vector<16x128xf32>
      %34 = math.exp %33 : vector<16x128xf32>
      %35 = math.log1p %34 : vector<16x128xf32>
      %36 = arith.addf %30, %35 : vector<16x128xf32>
      %37 = arith.addf %36, %24 : vector<16x128xf32>
      %38 = arith.mulf %26, %36 : vector<16x128xf32>
      %cst_12 = arith.constant 1.000000e+00 : f32
      %39 = vector.broadcast %cst_12 : f32 to vector<16x128xf32>
      %40 = arith.subf %39, %26 : vector<16x128xf32>
      %41 = arith.mulf %40, %37 : vector<16x128xf32>
      %cst_13 = arith.constant 0.000000e+00 : f32
      %42 = vector.broadcast %cst_13 : f32 to vector<16x128xf32>
      %43 = arith.select %22, %41, %42 : vector<16x128xi1>, vector<16x128xf32>
      %c0_14 = arith.constant 0 : index
      %c0_15 = arith.constant 0 : index
      %c0_16 = arith.constant 0 : index
      %44 = vector.load %arg4[%c0_14, %c0_15, %c0_16] : memref<1x8x128xf32, #tpu.memory_space<vmem>>, vector<1x8x128xf32>
      %45 = vector.shape_cast %26 : vector<16x128xf32> to vector<2x8x128xf32>
      %cst_17 = arith.constant dense<0.000000e+00> : vector<8x128xf32>
      %46 = vector.multi_reduction <add>, %45, %cst_17 [0] : vector<2x8x128xf32> to vector<8x128xf32>
      %47 = vector.shape_cast %46 : vector<8x128xf32> to vector<1x8x128xf32>
      %48 = arith.addf %44, %47 : vector<1x8x128xf32>
      %c0_18 = arith.constant 0 : index
      %c0_19 = arith.constant 0 : index
      %c0_20 = arith.constant 0 : index
      %49 = vector.load %arg4[%c0_18, %c0_19, %c0_20] : memref<1x8x128xf32, #tpu.memory_space<vmem>>, vector<1x8x128xf32>
      tpu.vector_store %arg4[%c0_18, %c0_19, %c0_20], %48 {strides = array<i32>} : memref<1x8x128xf32, #tpu.memory_space<vmem>>, vector<1x8x128xf32>,
      %c0_21 = arith.constant 0 : index
      %c0_22 = arith.constant 0 : index
      %c0_23 = arith.constant 0 : index
      %50 = vector.load %arg5[%c0_21, %c0_22, %c0_23] : memref<1x8x128xf32, #tpu.memory_space<vmem>>, vector<1x8x128xf32>
      %51 = vector.shape_cast %38 : vector<16x128xf32> to vector<2x8x128xf32>
      %cst_24 = arith.constant dense<0.000000e+00> : vector<8x128xf32>
      %52 = vector.multi_reduction <add>, %51, %cst_24 [0] : vector<2x8x128xf32> to vector<8x128xf32>
      %53 = vector.shape_cast %52 : vector<8x128xf32> to vector<1x8x128xf32>
      %54 = arith.addf %50, %53 : vector<1x8x128xf32>
      %c0_25 = arith.constant 0 : index
      %c0_26 = arith.constant 0 : index
      %c0_27 = arith.constant 0 : index
      %55 = vector.load %arg5[%c0_25, %c0_26, %c0_27] : memref<1x8x128xf32, #tpu.memory_space<vmem>>, vector<1x8x128xf32>
      tpu.vector_store %arg5[%c0_25, %c0_26, %c0_27], %54 {strides = array<i32>} : memref<1x8x128xf32, #tpu.memory_space<vmem>>, vector<1x8x128xf32>,
      %c0_28 = arith.constant 0 : index
      %c0_29 = arith.constant 0 : index
      %c0_30 = arith.constant 0 : index
      %56 = vector.load %arg6[%c0_28, %c0_29, %c0_30] : memref<1x8x128xf32, #tpu.memory_space<vmem>>, vector<1x8x128xf32>
      %57 = vector.shape_cast %43 : vector<16x128xf32> to vector<2x8x128xf32>
      %cst_31 = arith.constant dense<0.000000e+00> : vector<8x128xf32>
      %58 = vector.multi_reduction <add>, %57, %cst_31 [0] : vector<2x8x128xf32> to vector<8x128xf32>
      %59 = vector.shape_cast %58 : vector<8x128xf32> to vector<1x8x128xf32>
      %60 = arith.addf %56, %59 : vector<1x8x128xf32>
      %c0_32 = arith.constant 0 : index
      %c0_33 = arith.constant 0 : index
      %c0_34 = arith.constant 0 : index
      %61 = vector.load %arg6[%c0_32, %c0_33, %c0_34] : memref<1x8x128xf32, #tpu.memory_space<vmem>>, vector<1x8x128xf32>
      tpu.vector_store %arg6[%c0_32, %c0_33, %c0_34], %60 {strides = array<i32>} : memref<1x8x128xf32, #tpu.memory_space<vmem>>, vector<1x8x128xf32>,
    } else {
    }
    return
  }
  func.func @transform_0(%arg0: i32, %arg1: i32) -> (i32, i32) {
    %c1_i32 = arith.constant 1 : i32
    %0 = arith.muli %arg0, %c1_i32 : i32
    %1 = arith.addi %0, %arg1 : i32
    %c0_i32 = arith.constant 0 : i32
    %2 = arith.minsi %1, %c0_i32 : i32
    %c0_i32_0 = arith.constant 0 : i32
    %c0_i32_1 = arith.constant 0 : i32
    return %2, %c0_i32_0 : i32, i32
  }
  func.func @transform_1(%arg0: i32, %arg1: i32) -> (i32, i32) {
    %c1_i32 = arith.constant 1 : i32
    %0 = arith.muli %arg0, %c1_i32 : i32
    %1 = arith.addi %0, %arg1 : i32
    %c0_i32 = arith.constant 0 : i32
    %2 = arith.minsi %1, %c0_i32 : i32
    %c0_i32_0 = arith.constant 0 : i32
    %c0_i32_1 = arith.constant 0 : i32
    return %2, %c0_i32_0 : i32, i32
  }
  func.func @transform_2(%arg0: i32, %arg1: i32) -> (i32, i32, i32) {
    %c0_i32 = arith.constant 0 : i32
    %c0_i32_0 = arith.constant 0 : i32
    %c0_i32_1 = arith.constant 0 : i32
    return %arg0, %c0_i32, %c0_i32_0 : i32, i32, i32
  }
  func.func @transform_3(%arg0: i32, %arg1: i32) -> (i32, i32, i32) {
    %c0_i32 = arith.constant 0 : i32
    %c0_i32_0 = arith.constant 0 : i32
    %c0_i32_1 = arith.constant 0 : i32
    return %arg0, %c0_i32, %c0_i32_0 : i32, i32, i32
  }
  func.func @transform_4(%arg0: i32, %arg1: i32) -> (i32, i32, i32) {
    %c0_i32 = arith.constant 0 : i32
    %c0_i32_0 = arith.constant 0 : i32
    %c0_i32_1 = arith.constant 0 : i32
    return %arg0, %c0_i32, %c0_i32_0 : i32, i32, i32
  }
}

</mosaic_0001>

<llo_original>
// kernel: tpu_custom_call.1
$region0: #{tpu_custom_call.1}
  #allocation0 [shape = 'u32[]', space=smem, size = 0x4, offset = 0x4, fixed_abs, tag = 'smem constant byte address 0x4 - core index']
  #allocation1 [shape = 'u32[144,128]{1,0:T(1,128)}', space=vmem, size = 0x12000, scoped, tag = 'internal scratch']
  %s0 = inlined_call_operand.hbm [shape: f32[16,128], index: 0, kind: input, shape index: {}]
  %s1 = inlined_call_operand.hbm [shape: f32[16,128], index: 1, kind: input, shape index: {}]
  %s2 = inlined_call_operand.hbm [shape: f32[1,8,128], index: 2, kind: output, shape index: {0}]
  %s3 = inlined_call_operand.hbm [shape: f32[1,8,128], index: 3, kind: output, shape index: {1}]
  %s4 = inlined_call_operand.hbm [shape: f32[1,8,128], index: 4, kind: output, shape index: {2}]
  %5 = xla_tuple %s2, %s3, %s4
  %s6 = sld [smem:[#allocation0]]
  $region54: #{tpu_custom_call.1} parent=0
    _
  %s8 = ssub.s32 1, %s6
  %s9 = scalar_select 0, %s8, %s6
  $region1: #{tpu_custom_call.1} parent=0
    #allocation2 [shape = 'u8[8192]{0}', space=vmem, size = 0x2000, scoped, tag = 'input window, operand 0, single buffered']
    #allocation3 [shape = 's32[1]{0}', space=sflag, size = 0x4, scoped, tag = 'scoped memory for tpu_custom_call.1']
    #allocation4 [shape = 's32[1]{0}', space=sflag, size = 0x4, scoped, tag = 'scoped memory for tpu_custom_call.1']
    #allocation5 [shape = 'u8[8192]{0}', space=vmem, size = 0x2000, scoped, tag = 'input window, operand 1, single buffered']
    #allocation6 [shape = 's32[1]{0}', space=sflag, size = 0x4, scoped, tag = 'scoped memory for tpu_custom_call.1']
    #allocation7 [shape = 'u8[4096]{0}', space=vmem, size = 0x1000, scoped, tag = 'output window, operand 0, single buffered']
    #allocation8 [shape = 'u8[4096]{0}', space=vmem, size = 0x1000, scoped, tag = 'output window, operand 1, single buffered']
    #allocation9 [shape = 's32[1]{0}', space=sflag, size = 0x4, scoped, tag = 'scoped memory for tpu_custom_call.1']
    #allocation10 [shape = 'u8[4096]{0}', space=vmem, size = 0x1000, scoped, tag = 'output window, operand 2, single buffered']
    %10 = vsyncpa [#allocation3], 0
    %11 = vsyncpa [#allocation6], 0
    %12 = vsyncpa [#allocation4], 0
    %13 = vsyncpa [#allocation9], 0
    // Predicated region
    $region2: #{tpu_custom_call.1} parent=1 // pred_check
      _
    $region3: #{tpu_custom_call.1} parent=1 // pred_check_branch
      %15 = sbr.rel (0) target = $region5
    $region4: #{tpu_custom_call.1} parent=1 // pred_region
      %s16 = sadd.s32 0, 0
      %p17 = scmp.lt.s32.totalorder %s16, 0
      %s18 = scalar_select %p17, %s16, 0
      %s19 = smul.u32 2, %s18
      %s21 = ssub.s32 256, 256
      %22 = vsyncadd [#allocation3], %s21
      %s23 = smul.addr %s19, 128
      %s24 = scalar_lea.hbm %s0, %s23
      %s25 = sshll.u32 [#allocation2], 4
      %s26 = int_to_ptr.vmem [resolvable:$true] %s25
      %31 = dma.hbm_to_vmem [thread:$0]  %s24, 256, %s26, [#allocation3], 128, 128, 8
    $region5: #{tpu_custom_call.1} parent=1 // pred_fallthru
      _
    // Predicated region
    $region6: #{tpu_custom_call.1} parent=1 // pred_check
      _
    $region7: #{tpu_custom_call.1} parent=1 // pred_check_branch
      %33 = sbr.rel (0) target = $region9
    $region8: #{tpu_custom_call.1} parent=1 // pred_region
      %s34 = sadd.s32 0, 0
      %p35 = scmp.lt.s32.totalorder %s34, 0
      %s36 = scalar_select %p35, %s34, 0
      %s37 = smul.u32 2, %s36
      %s39 = ssub.s32 256, 256
      %40 = vsyncadd [#allocation6], %s39
      %s41 = smul.addr %s37, 128
      %s42 = scalar_lea.hbm %s1, %s41
      %s43 = sshll.u32 [#allocation5], 4
      %s44 = int_to_ptr.vmem [resolvable:$true] %s43
      %49 = dma.hbm_to_vmem [thread:$0]  %s42, 256, %s44, [#allocation6], 128, 128, 8
    $region9: #{tpu_custom_call.1} parent=1 // pred_fallthru
      _
    // Predicated region
    $region10: #{tpu_custom_call.1} parent=1 // pred_check
      _
    $region11: #{tpu_custom_call.1} parent=1 // pred_check_branch
      %51 = sbr.rel (0) target = $region13
    $region12: #{tpu_custom_call.1} parent=1 // pred_region
      %52 = dma.done [#allocation3], 256
    $region13: #{tpu_custom_call.1} parent=1 // pred_fallthru
      _
    // Predicated region
    $region14: #{tpu_custom_call.1} parent=1 // pred_check
      _
    $region15: #{tpu_custom_call.1} parent=1 // pred_check_branch
      %54 = sbr.rel (0) target = $region17
    $region16: #{tpu_custom_call.1} parent=1 // pred_region
      %55 = dma.done [#allocation6], 256
    $region17: #{tpu_custom_call.1} parent=1 // pred_fallthru
      _
    %s56 = sadd.s32 0, 0
    %p57 = scmp.lt.s32.totalorder %s56, 0
    %s58 = scalar_select %p57, %s56, 0
    %s59 = smul.u32 2, %s58
    %s60 = sadd.s32 0, 0
    %p61 = scmp.lt.s32.totalorder %s60, 0
    %s62 = scalar_select %p61, %s60, 0
    %s63 = smul.u32 2, %s62
    %s64 = sadd.s32 0, 0
    %p65 = scmp.eq.s32.totalorder 0, 0
    // Predicated region
    $region18: #{tpu_custom_call.1} parent=1 // pred_check
      %p66 = pneg %p65
    $region19: #{tpu_custom_call.1} parent=1 // pred_check_branch
      %68 = sbr.rel (%p66) target = $region21
    $region20: #{tpu_custom_call.1} parent=1 // pred_region
      %69 = vst [vmem:[#allocation7] sm:$0xff] 0.0
      %70 = vst [vmem:[#allocation8] sm:$0xff] 0.0
      %71 = vst [vmem:[#allocation10] sm:$0xff] 0.0
    $region21: #{tpu_custom_call.1} parent=1 // pred_fallthru
      _
    %v72 = vld [vmem:[#allocation2] sm:$0xff]
    %v73 = vld [vmem:[#allocation2 + $0x8] sm:$0xff]
    %v74 = vld [vmem:[#allocation5] sm:$0xff]
    %v75 = vld [vmem:[#allocation5 + $0x8] sm:$0xff]
    %p76 = scmp.lt.s32.totalorder %s64, 0
    // Predicated region
    $region22: #{tpu_custom_call.1} parent=1 // pred_check
      %p77 = pneg %p76
    $region23: #{tpu_custom_call.1} parent=1 // pred_check_branch
      %79 = sbr.rel (%p77) target = $region25
    $region24: #{tpu_custom_call.1} parent=1 // pred_region
      %v80 = vsub.f32 0.0, %v72
      %v81 = vsub.f32 0.0, %v73
      %v82 = vmax.f32 %v80, 0.0
      %v83 = vmax.f32 %v81, 0.0
      %v84 = vand.u32 2147483647, %v72
      %v85 = vand.u32 2147483647, %v73
      %v86 = vsub.f32 0.0, %v84
      %v87 = vsub.f32 0.0, %v85
      %v88 = vmul.f32 %v86, 1.442695
      %v89 = vpow.pop %v88
      %v90 = vmul.f32 %v87, 1.442695
      %v91 = vpow.pop %v90
      %v92 = vadd.f32 %v89, 1.0
      %v93 = vlog2.pop %v92
      %v94 = vmul.f32 %v93, 0.6931472
      %v95 = vmul.f32 -0.5, %v89
      %v96 = vadd.f32 %v95, 1.0
      %v97 = vmul.f32 %v96, %v89
      %v98 = vand.u32 2147483647, %v89
      %vm99 = vcmp.lt.f32.partialorder %v98, 0.0004427343
      %v100 = vsel %vm99, %v97, %v94
      %v101 = vadd.f32 %v91, 1.0
      %v102 = vlog2.pop %v101
      %v103 = vmul.f32 %v102, 0.6931472
      %v104 = vmul.f32 -0.5, %v91
      %v105 = vadd.f32 %v104, 1.0
      %v106 = vmul.f32 %v105, %v91
      %v107 = vand.u32 2147483647, %v91
      %vm108 = vcmp.lt.f32.partialorder %v107, 0.0004427343
      %v109 = vsel %vm108, %v106, %v103
      %v110 = vadd.f32 %v82, %v100
      %v111 = vadd.f32 %v83, %v109
      %v112 = vadd.f32 %v110, %v72
      %v113 = vadd.f32 %v111, %v73
      %v114 = vmul.f32 %v74, %v110
      %v115 = vmul.f32 %v75, %v111
      %v116 = vsub.f32 1.0, %v74
      %v117 = vsub.f32 1.0, %v75
      %v118 = vmul.f32 %v116, %v112
      %v119 = vmul.f32 %v117, %v113
      %v120 = vld [vmem:[#allocation7] sm:$0xff]
      %v121 = vadd.f32 %v74, %v75
      %v122 = vadd.f32 %v120, %v121
      %123 = vst [vmem:[#allocation7] sm:$0xff] %v122
      %v124 = vld [vmem:[#allocation8] sm:$0xff]
      %v125 = vadd.f32 %v114, %v115
      %v126 = vadd.f32 %v124, %v125
      %127 = vst [vmem:[#allocation8] sm:$0xff] %v126
      %v128 = vld [vmem:[#allocation10] sm:$0xff]
      %v129 = vadd.f32 %v118, %v119
      %v130 = vadd.f32 %v128, %v129
      %131 = vst [vmem:[#allocation10] sm:$0xff] %v130
    $region25: #{tpu_custom_call.1} parent=1 // pred_fallthru
      _
    %p132 = scmp.ge.s32.totalorder %s64, 0
    // Predicated region
    $region26: #{tpu_custom_call.1} parent=1 // pred_check
      %p133 = pneg %p132
    $region27: #{tpu_custom_call.1} parent=1 // pred_check_branch
      %135 = sbr.rel (%p133) target = $region29
    $region28: #{tpu_custom_call.1} parent=1 // pred_region
      %v136 = vlaneseq
      %v137 = vshrl.u32 %v136, 7
      %v138 = vadd.s32 %v137, 8
      %v139 = vlaneseq
      %v140 = vand.u32 %v139, 127
      %s141 = smul.u32 %s64, 16
      %v142 = vstv %s141
      %v143 = vadd.s32 %v142, %v137
      %v144 = vadd.s32 %v142, %v138
      %v145 = vmul.u32 %v143, 128
      %v146 = vmul.u32 %v144, 128
      %v147 = vadd.s32 %v145, %v140
      %v148 = vadd.s32 %v146, %v140
      %vm149 = vcmp.lt.s32.totalorder %v147, 2048
      %vm150 = vcmp.lt.s32.totalorder %v148, 2048
      %v151 = vsel %vm149, %v72, 0.0
      %v152 = vsel %vm150, %v73, 0.0
      %v153 = vsel %vm149, %v74, 0.0
      %v154 = vsel %vm150, %v75, 0.0
      %v155 = vsub.f32 0.0, %v151
      %v156 = vsub.f32 0.0, %v152
      %v157 = vmax.f32 %v155, 0.0
      %v158 = vmax.f32 %v156, 0.0
      %v159 = vand.u32 2147483647, %v151
      %v160 = vand.u32 2147483647, %v152
      %v161 = vsub.f32 0.0, %v159
      %v162 = vsub.f32 0.0, %v160
      %v163 = vmul.f32 %v161, 1.442695
      %v164 = vpow.pop %v163
      %v165 = vmul.f32 %v162, 1.442695
      %v166 = vpow.pop %v165
      %v167 = vadd.f32 %v164, 1.0
      %v168 = vlog2.pop %v167
      %v169 = vmul.f32 %v168, 0.6931472
      %v170 = vmul.f32 -0.5, %v164
      %v171 = vadd.f32 %v170, 1.0
      %v172 = vmul.f32 %v171, %v164
      %v173 = vand.u32 2147483647, %v164
      %vm174 = vcmp.lt.f32.partialorder %v173, 0.0004427343
      %v175 = vsel %vm174, %v172, %v169
      %v176 = vadd.f32 %v166, 1.0
      %v177 = vlog2.pop %v176
      %v178 = vmul.f32 %v177, 0.6931472
      %v179 = vmul.f32 -0.5, %v166
      %v180 = vadd.f32 %v179, 1.0
      %v181 = vmul.f32 %v180, %v166
      %v182 = vand.u32 2147483647, %v166
      %vm183 = vcmp.lt.f32.partialorder %v182, 0.0004427343
      %v184 = vsel %vm183, %v181, %v178
      %v185 = vadd.f32 %v157, %v175
      %v186 = vadd.f32 %v158, %v184
      %v187 = vadd.f32 %v185, %v151
      %v188 = vadd.f32 %v186, %v152
      %v189 = vmul.f32 %v153, %v185
      %v190 = vmul.f32 %v154, %v186
      %v191 = vsub.f32 1.0, %v153
      %v192 = vsub.f32 1.0, %v154
      %v193 = vmul.f32 %v191, %v187
      %v194 = vmul.f32 %v192, %v188
      %v195 = vsel %vm149, %v193, 0.0
      %v196 = vsel %vm150, %v194, 0.0
      %v197 = vld [vmem:[#allocation7] sm:$0xff]
      %v198 = vadd.f32 %v153, %v154
      %v199 = vadd.f32 %v197, %v198
      %200 = vst [vmem:[#allocation7] sm:$0xff] %v199
      %v201 = vld [vmem:[#allocation8] sm:$0xff]
      %v202 = vadd.f32 %v189, %v190
      %v203 = vadd.f32 %v201, %v202
      %204 = vst [vmem:[#allocation8] sm:$0xff] %v203
      %v205 = vld [vmem:[#allocation10] sm:$0xff]
      %v206 = vadd.f32 %v195, %v196
      %v207 = vadd.f32 %v205, %v206
      %208 = vst [vmem:[#allocation10] sm:$0xff] %v207
    $region29: #{tpu_custom_call.1} parent=1 // pred_fallthru
      _
    // Predicated region
    $region30: #{tpu_custom_call.1} parent=1 // pred_check
      _
    $region31: #{tpu_custom_call.1} parent=1 // pred_check_branch
      %210 = sbr.rel (0) target = $region33
    $region32: #{tpu_custom_call.1} parent=1 // pred_region
      %s212 = ssub.s32 128, 128
      %213 = vsyncadd [#allocation4], %s212
      %s215 = sshll.u32 [#allocation7], 4
      %s216 = int_to_ptr.vmem [resolvable:$true] %s215
      %218 = dma.vmem_to_hbm [thread:$0]  %s216, 128, %s2, [#allocation4]
    $region33: #{tpu_custom_call.1} parent=1 // pred_fallthru
      _
    // Predicated region
    $region34: #{tpu_custom_call.1} parent=1 // pred_check
      _
    $region35: #{tpu_custom_call.1} parent=1 // pred_check_branch
      %220 = sbr.rel (0) target = $region37
    $region36: #{tpu_custom_call.1} parent=1 // pred_region
      %s222 = ssub.s32 128, 128
      %223 = vsyncadd [#allocation9], %s222
      %s225 = sshll.u32 [#allocation8], 4
      %s226 = int_to_ptr.vmem [resolvable:$true] %s225
      %228 = dma.vmem_to_hbm [thread:$0]  %s226, 128, %s3, [#allocation9]
    $region37: #{tpu_custom_call.1} parent=1 // pred_fallthru
      _
    // Predicated region
    $region38: #{tpu_custom_call.1} parent=1 // pred_check
      _
    $region39: #{tpu_custom_call.1} parent=1 // pred_check_branch
      %230 = sbr.rel (0) target = $region41
    $region40: #{tpu_custom_call.1} parent=1 // pred_region
      %s232 = ssub.s32 128, 128
      %233 = vsyncadd [#allocation9], %s232
      %s235 = sshll.u32 [#allocation10], 4
      %s236 = int_to_ptr.vmem [resolvable:$true] %s235
      %238 = dma.vmem_to_hbm [thread:$0]  %s236, 128, %s4, [#allocation9]
    $region41: #{tpu_custom_call.1} parent=1 // pred_fallthru
      _
    // Predicated region
    $region42: #{tpu_custom_call.1} parent=1 // pred_check
      _
    $region43: #{tpu_custom_call.1} parent=1 // pred_check_branch
      %240 = sbr.rel (0) target = $region45
    $region44: #{tpu_custom_call.1} parent=1 // pred_region
      %241 = dma.done [#allocation4], 128
    $region45: #{tpu_custom_call.1} parent=1 // pred_fallthru
      _
    // Predicated region
    $region46: #{tpu_custom_call.1} parent=1 // pred_check
      _
    $region47: #{tpu_custom_call.1} parent=1 // pred_check_branch
      %243 = sbr.rel (0) target = $region49
    $region48: #{tpu_custom_call.1} parent=1 // pred_region
      %244 = dma.done [#allocation9], 128
    $region49: #{tpu_custom_call.1} parent=1 // pred_fallthru
      _
    // Predicated region
    $region50: #{tpu_custom_call.1} parent=1 // pred_check
      _
    $region51: #{tpu_custom_call.1} parent=1 // pred_check_branch
      %246 = sbr.rel (0) target = $region53
    $region52: #{tpu_custom_call.1} parent=1 // pred_region
      %247 = dma.done [#allocation9], 128
    $region53: #{tpu_custom_call.1} parent=1 // pred_fallthru
      _
    %248 = vsyncpa [#allocation3], 1
    %249 = vsyncpa [#allocation6], 1
    %250 = vsyncpa [#allocation4], 1
    %251 = vsyncpa [#allocation9], 1

</llo_original>
